<compile_context>
chip_gen: v7x
topology: tpu7x:2x2x1
jax: 0.10.0
libtpu: 0.0.40
codegen_flags: <defaults>
</compile_context>

<pallas_src>
import functools

import jax
import jax.numpy as jnp
import numpy as np
from jax.experimental import pallas as pl
from jax.experimental.pallas import tpu as pltpu


def _ece_bins_kernel(logits_ref, labels_ref, bins_ref, *, n_bins, rank, n_valid):
    """Accumulate per-bin [count, sum(conf), sum(acc)] into bins_ref (3, n_bins)."""
    s = pl.program_id(0)                 # core-split axis ("parallel")
    i = pl.program_id(1)                 # batch-tile axis ("arbitrary" reduction)
    tiles_per_split = pl.num_programs(1)
    tile_n = logits_ref.shape[0]

    @pl.when(i == 0)
    def _():
        bins_ref[...] = jnp.zeros_like(bins_ref)

    x = logits_ref[...].astype(jnp.float32)                     # (tile_n, C)

    # Softmax denominator only (no full normalization of the (tile_n, C) tile).
    m = jnp.max(x, axis=1, keepdims=True)                       # (tile_n, 1)
    denom = jnp.sum(jnp.exp(x - m), axis=1, keepdims=True)      # (tile_n, 1)

    # rank-th largest logit == rank-th largest softmax prob (monotonic).
    cur = x
    for _ in range(rank):  # static Python loop; rank is a compile-time int
        cm = jnp.max(cur, axis=1, keepdims=True)
        cur = jnp.where(cur >= cm, -jnp.inf, cur)
    xk = jnp.max(cur, axis=1, keepdims=True)                    # (tile_n, 1)
    col = jax.lax.broadcasted_iota(jnp.int32, cur.shape, 1)
    pred = jnp.min(jnp.where(cur == xk, col, cur.shape[1]),
                   axis=1, keepdims=True)                       # (tile_n, 1)

    conf = jnp.exp(xk - m) / denom                              # (tile_n, 1), exact
    acc = (pred == labels_ref[...]).astype(jnp.float32)         # (tile_n, 1)

    # Tail mask: rows beyond the true batch size contribute nothing.
    row = jax.lax.broadcasted_iota(jnp.int32, (tile_n, 1), 0)
    global_row = (s * tiles_per_split + i) * tile_n + row
    conf = jnp.where(global_row < n_valid, conf, 0.0)           # conf==0 -> no bin

    # Arithmetic binning; bin b covers (b/n_bins, (b+1)/n_bins], same open/closed
    # boundaries as the torch reference (conf > lower, conf <= upper).
    bin_idx = jnp.ceil(conf * n_bins).astype(jnp.int32) - 1     # (tile_n, 1)
    bins_iota = jax.lax.broadcasted_iota(jnp.int32, (tile_n, n_bins), 1)
    in_bin = (bin_idx == bins_iota).astype(jnp.float32)         # one-hot (tile_n, n_bins)

    partial = jnp.concatenate(
        [jnp.sum(in_bin, axis=0, keepdims=True),
         jnp.sum(in_bin * conf, axis=0, keepdims=True),
         jnp.sum(in_bin * acc, axis=0, keepdims=True)],
        axis=0)                                                 # (3, n_bins)
    bins_ref[...] += partial


def ece_loss(logits, labels, *, n_bins=10, rank=0, tile_n=1024, num_splits=1):
    """Pallas implementation of _ECELoss.forward. Returns an f32 scalar.

    num_splits: set to 2 on TPU v7x (2 TensorCores/chip). The leading grid axis
    is "parallel"; each core keeps its own (3, n_bins) partial and the tiny
    combine runs in plain JAX below. On v5e/v6e it just iterates sequentially.
    """
    N, C = logits.shape
    labels2d = labels.reshape(N, 1).astype(jnp.int32)

    # Tile sizing: as large as possible (amortize ~0.35us/step + DMA setup and
    # reach HBM roofline), capped so double-buffered inputs + temps stay well
    # inside v7x's 64 MiB VMEM, rounded to a multiple of 16 (f32 and bf16 safe).
    bytes_per_row = C * logits.dtype.itemsize + 4
    vmem_cap_rows = max(16, (8 * 1024 * 1024) // bytes_per_row)
    tile = min(int(tile_n), vmem_cap_rows, pl.cdiv(N, 16) * 16)
    tile = max(16, (tile // 16) * 16)

    total_tiles = pl.cdiv(N, tile)
    splits = max(1, min(int(num_splits), total_tiles))
    tiles_per_split = pl.cdiv(total_tiles, splits)

    def in_index(s, i):
        # Clamp the (rare) over-hang block of the last split so the DMA stays in
        # bounds; its rows are >= N and are masked out inside the kernel.
        blk = jnp.minimum(s * tiles_per_split + i, total_tiles - 1)
        return (blk, 0)

    kernel = functools.partial(_ece_bins_kernel,
                               n_bins=n_bins, rank=rank, n_valid=N)

    partials = pl.pallas_call(
        kernel,
        out_shape=jax.ShapeDtypeStruct((splits, 3, n_bins), jnp.float32),
        grid_spec=pltpu.PrefetchScalarGridSpec(
            num_scalar_prefetch=0,
            grid=(splits, tiles_per_split),
            in_specs=[
                pl.BlockSpec((tile, C), in_index),
                pl.BlockSpec((tile, 1), in_index),
            ],
            out_specs=pl.BlockSpec((None, 3, n_bins), lambda s, i: (s, 0, 0)),
        ),
        compiler_params=pltpu.CompilerParams(
            dimension_semantics=("parallel", "arbitrary")),
    )(logits, labels2d)

    # Tiny 10-bin combine in plain JAX, mirroring the PyTorch loop exactly.
    totals = jnp.sum(partials, axis=0)                 # (3, n_bins)
    cnt, conf_sum, acc_sum = totals[0], totals[1], totals[2]
    prop = cnt / float(N)
    safe = jnp.maximum(cnt, 1.0)
    contrib = jnp.where(cnt > 5.0,
                        jnp.abs(conf_sum / safe - acc_sum / safe) * prop, 0.0)
    # TODO(synk): torch returns ece.detach().cpu().item(); we return a JAX scalar.
    return jnp.sum(contrib)


def ece_reference(logits, labels, *, n_bins=10, rank=0):
    """Plain-JAX reference mirroring the PyTorch module."""
    probs = jax.nn.softmax(logits.astype(jnp.float32), axis=1)
    order = jnp.argsort(-probs, axis=1)
    pred = order[:, rank]
    conf = jnp.take_along_axis(probs, pred[:, None], axis=1)[:, 0]
    acc = (pred == labels).astype(jnp.float32)
    bounds = jnp.linspace(0.0, 1.0, n_bins + 1)
    ece = 0.0
    n = logits.shape[0]
    for b in range(n_bins):
        in_bin = (conf > bounds[b]) & (conf <= bounds[b + 1])
        cnt = jnp.sum(in_bin.astype(jnp.float32))
        prop = cnt / n
        safe = jnp.maximum(cnt, 1.0)
        avg_conf = jnp.sum(jnp.where(in_bin, conf, 0.0)) / safe
        avg_acc = jnp.sum(jnp.where(in_bin, acc, 0.0)) / safe
        ece = ece + jnp.where(cnt > 5.0, jnp.abs(avg_conf - avg_acc) * prop, 0.0)
    return ece


if __name__ == "__main__":
    key = jax.random.PRNGKey(0)
    k1, k2 = jax.random.split(key)
    N, C = 300, 16  # N not a multiple of the tile -> exercises the tail mask
    logits = jax.random.normal(k1, (N, C), dtype=jnp.float32) * 3.0
    labels = jax.random.randint(k2, (N,), 0, C, dtype=jnp.int32)

    for r in (0, 1):
        ece = ece_loss(logits, labels, n_bins=10, rank=r, tile_n=128, num_splits=2)
        ece = jax.block_until_ready(ece)
        ref = jax.block_until_ready(ece_reference(logits, labels, n_bins=10, rank=r))
        np.testing.assert_allclose(np.asarray(ece), np.asarray(ref),
                                   atol=3e-5, rtol=1e-4)

    print("KERNEL_OK")
</pallas_src>

<mosaic_0001>
module attributes {stable_mosaic.version = 11 : i64} {
  func.func @_ece_bins_kernel(%arg0: i32, %arg1: i32, %arg2: memref<128x16xf32, #tpu.memory_space<vmem>>, %arg3: memref<128x1xi32, #tpu.memory_space<vmem>>, %arg4: memref<1x3x10xf32, #tpu.memory_space<vmem>>) attributes {dimension_semantics = [#tpu.dimension_semantics<parallel>, #tpu.dimension_semantics<arbitrary>], iteration_bounds = array<i64: 2, 2>, scalar_prefetch = 0 : i64, scratch_operands = 0 : i64, tpu.core_type = #tpu.core_type<tc>, window_params = [{transform_indices = @transform_0, window_bounds = array<i64: 128, 16>}, {transform_indices = @transform_1, window_bounds = array<i64: 128, 1>}, {transform_indices = @transform_2, window_bounds = array<i64: 1, 3, 10>}]} {
    %c0_i32 = arith.constant 0 : i32
    %0 = arith.cmpi eq, %arg1, %c0_i32 : i32
    %1 = arith.extui %0 : i1 to i32
    %c0_i32_0 = arith.constant 0 : i32
    %2 = arith.cmpi ne, %1, %c0_i32_0 : i32
    scf.if %2 {
      %cst_18 = arith.constant 0.000000e+00 : f32
      %65 = vector.broadcast %cst_18 : f32 to vector<3x10xf32>
      %c0_19 = arith.constant 0 : index
      %c0_20 = arith.constant 0 : index
      %c0_21 = arith.constant 0 : index
      %66 = vector.load %arg4[%c0_19, %c0_20, %c0_21] : memref<1x3x10xf32, #tpu.memory_space<vmem>>, vector<1x3x10xf32>
      %67 = vector.shape_cast %66 : vector<1x3x10xf32> to vector<3x10xf32>
      %68 = vector.shape_cast %65 : vector<3x10xf32> to vector<1x3x10xf32>
      tpu.vector_store %arg4[%c0_19, %c0_20, %c0_21], %68 {strides = array<i32>} : memref<1x3x10xf32, #tpu.memory_space<vmem>>, vector<1x3x10xf32>,
    } else {
    }
    %c0 = arith.constant 0 : index
    %c0_1 = arith.constant 0 : index
    %3 = vector.load %arg2[%c0, %c0_1] : memref<128x16xf32, #tpu.memory_space<vmem>>, vector<128x16xf32>
    %cst = arith.constant dense<0xFF800000> : vector<128xf32>
    %4 = vector.multi_reduction <maximumf>, %3, %cst [1] : vector<128x16xf32> to vector<128xf32>
    %5 = vector.shape_cast %4 : vector<128xf32> to vector<128x1xf32>
    %6 = vector.broadcast %5 : vector<128x1xf32> to vector<128x16xf32>
    %7 = arith.subf %3, %6 : vector<128x16xf32>
    %8 = math.exp %7 : vector<128x16xf32>
    %cst_2 = arith.constant dense<0.000000e+00> : vector<128xf32>
    %9 = vector.multi_reduction <add>, %8, %cst_2 [1] : vector<128x16xf32> to vector<128xf32>
    %10 = vector.shape_cast %9 : vector<128xf32> to vector<128x1xf32>
    %cst_3 = arith.constant dense<0xFF800000> : vector<128xf32>
    %11 = vector.multi_reduction <maximumf>, %3, %cst_3 [1] : vector<128x16xf32> to vector<128xf32>
    %12 = vector.shape_cast %11 : vector<128xf32> to vector<128x1xf32>
    %13 = tpu.iota {dimensions = array<i32: 1>} : vector<128x16xi32>
    %14 = vector.broadcast %12 : vector<128x1xf32> to vector<128x16xf32>
    %15 = arith.cmpf oeq, %3, %14 : vector<128x16xf32>
    %c16_i32 = arith.constant 16 : i32
    %16 = vector.broadcast %c16_i32 : i32 to vector<128x16xi32>
    %17 = arith.select %15, %13, %16 : vector<128x16xi1>, vector<128x16xi32>
    %cst_4 = arith.constant dense<2147483647> : vector<128xi32>
    %18 = vector.multi_reduction <minsi>, %17, %cst_4 [1] : vector<128x16xi32> to vector<128xi32>
    %19 = vector.shape_cast %18 : vector<128xi32> to vector<128x1xi32>
    %20 = arith.subf %12, %5 : vector<128x1xf32>
    %21 = math.exp %20 : vector<128x1xf32>
    %22 = arith.divf %21, %10 : vector<128x1xf32>
    %c0_5 = arith.constant 0 : index
    %c0_6 = arith.constant 0 : index
    %23 = vector.load %arg3[%c0_5, %c0_6] : memref<128x1xi32, #tpu.memory_space<vmem>>, vector<128x1xi32>
    %24 = arith.cmpi eq, %19, %23 : vector<128x1xi32>
    %25 = arith.extui %24 : vector<128x1xi1> to vector<128x1xi32>
    %26 = arith.sitofp %25 : vector<128x1xi32> to vector<128x1xf32>
    %27 = tpu.iota {dimensions = array<i32: 0>} : vector<128x1xi32>
    %c2_i32 = arith.constant 2 : i32
    %28 = arith.muli %arg0, %c2_i32 : i32
    %29 = arith.addi %28, %arg1 : i32
    %c128_i32 = arith.constant 128 : i32
    %30 = arith.muli %29, %c128_i32 : i32
    %31 = vector.broadcast %30 : i32 to vector<128x1xi32>
    %32 = arith.addi %31, %27 : vector<128x1xi32>
    %c300_i32 = arith.constant 300 : i32
    %33 = vector.broadcast %c300_i32 : i32 to vector<128x1xi32>
    %34 = arith.cmpi slt, %32, %33 : vector<128x1xi32>
    %cst_7 = arith.constant 0.000000e+00 : f32
    %35 = vector.broadcast %cst_7 : f32 to vector<128x1xf32>
    %36 = arith.select %34, %22, %35 : vector<128x1xi1>, vector<128x1xf32>
    %cst_8 = arith.constant 1.000000e+01 : f32
    %37 = vector.broadcast %cst_8 : f32 to vector<128x1xf32>
    %38 = arith.mulf %36, %37 : vector<128x1xf32>
    %39 = math.ceil %38 : vector<128x1xf32>
    %40 = arith.fptosi %39 : vector<128x1xf32> to vector<128x1xi32>
    %c1_i32 = arith.constant 1 : i32
    %41 = vector.broadcast %c1_i32 : i32 to vector<128x1xi32>
    %42 = arith.subi %40, %41 : vector<128x1xi32>
    %43 = tpu.iota {dimensions = array<i32: 1>} : vector<128x10xi32>
    %44 = vector.broadcast %42 : vector<128x1xi32> to vector<128x10xi32>
    %45 = arith.cmpi eq, %44, %43 : vector<128x10xi32>
    %46 = arith.extui %45 : vector<128x10xi1> to vector<128x10xi32>
    %47 = arith.sitofp %46 : vector<128x10xi32> to vector<128x10xf32>
    %cst_9 = arith.constant dense<0.000000e+00> : vector<10xf32>
    %48 = vector.multi_reduction <add>, %47, %cst_9 [0] : vector<128x10xf32> to vector<10xf32>
    %49 = vector.shape_cast %48 : vector<10xf32> to vector<1x10xf32>
    %50 = vector.broadcast %36 : vector<128x1xf32> to vector<128x10xf32>
    %51 = arith.mulf %47, %50 : vector<128x10xf32>
    %cst_10 = arith.constant dense<0.000000e+00> : vector<10xf32>
    %52 = vector.multi_reduction <add>, %51, %cst_10 [0] : vector<128x10xf32> to vector<10xf32>
    %53 = vector.shape_cast %52 : vector<10xf32> to vector<1x10xf32>
    %54 = vector.broadcast %26 : vector<128x1xf32> to vector<128x10xf32>
    %55 = arith.mulf %47, %54 : vector<128x10xf32>
    %cst_11 = arith.constant dense<0.000000e+00> : vector<10xf32>
    %56 = vector.multi_reduction <add>, %55, %cst_11 [0] : vector<128x10xf32> to vector<10xf32>
    %57 = vector.shape_cast %56 : vector<10xf32> to vector<1x10xf32>
    %58 = tpu.concatenate %49, %53, %57 in 0 : vector<1x10xf32>, vector<1x10xf32>, vector<1x10xf32> -> vector<3x10xf32>
    %c0_12 = arith.constant 0 : index
    %c0_13 = arith.constant 0 : index
    %c0_14 = arith.constant 0 : index
    %59 = vector.load %arg4[%c0_12, %c0_13, %c0_14] : memref<1x3x10xf32, #tpu.memory_space<vmem>>, vector<1x3x10xf32>
    %60 = vector.shape_cast %59 : vector<1x3x10xf32> to vector<3x10xf32>
    %61 = arith.addf %60, %58 : vector<3x10xf32>
    %c0_15 = arith.constant 0 : index
    %c0_16 = arith.constant 0 : index
    %c0_17 = arith.constant 0 : index
    %62 = vector.load %arg4[%c0_15, %c0_16, %c0_17] : memref<1x3x10xf32, #tpu.memory_space<vmem>>, vector<1x3x10xf32>
    %63 = vector.shape_cast %62 : vector<1x3x10xf32> to vector<3x10xf32>
    %64 = vector.shape_cast %61 : vector<3x10xf32> to vector<1x3x10xf32>
    tpu.vector_store %arg4[%c0_15, %c0_16, %c0_17], %64 {strides = array<i32>} : memref<1x3x10xf32, #tpu.memory_space<vmem>>, vector<1x3x10xf32>,
    return
  }
  func.func @transform_0(%arg0: i32, %arg1: i32) -> (i32, i32) {
    %c2_i32 = arith.constant 2 : i32
    %0 = arith.muli %arg0, %c2_i32 : i32
    %1 = arith.addi %0, %arg1 : i32
    %c2_i32_0 = arith.constant 2 : i32
    %2 = arith.minsi %1, %c2_i32_0 : i32
    %c0_i32 = arith.constant 0 : i32
    %c0_i32_1 = arith.constant 0 : i32
    return %2, %c0_i32 : i32, i32
  }
  func.func @transform_1(%arg0: i32, %arg1: i32) -> (i32, i32) {
    %c2_i32 = arith.constant 2 : i32
    %0 = arith.muli %arg0, %c2_i32 : i32
    %1 = arith.addi %0, %arg1 : i32
    %c2_i32_0 = arith.constant 2 : i32
    %2 = arith.minsi %1, %c2_i32_0 : i32
    %c0_i32 = arith.constant 0 : i32
    %c0_i32_1 = arith.constant 0 : i32
    return %2, %c0_i32 : i32, i32
  }
  func.func @transform_2(%arg0: i32, %arg1: i32) -> (i32, i32, i32) {
    %c0_i32 = arith.constant 0 : i32
    %c0_i32_0 = arith.constant 0 : i32
    %c0_i32_1 = arith.constant 0 : i32
    return %arg0, %c0_i32, %c0_i32_0 : i32, i32, i32
  }
}

</mosaic_0001>

<llo_original>
// kernel: tpu_custom_call.1
$region0: #{tpu_custom_call.1}
  #allocation0 [shape = 'u32[]', space=smem, size = 0x4, offset = 0x4, fixed_abs, tag = 'smem constant byte address 0x4 - core index']
  #allocation1 [shape = 'u32[144,128]{1,0:T(1,128)}', space=vmem, size = 0x12000, scoped, tag = 'internal scratch']
  %s0 = inlined_call_operand.vmem [shape: f32[300,16], index: 0, kind: input, shape index: {}]
  %s1 = inlined_call_operand.vmem [shape: s32[300,1], index: 1, kind: input, shape index: {}]
  %s2 = inlined_call_operand.vmem [shape: f32[2,3,10], index: 2, kind: output, shape index: {}]
  %s3 = sld [smem:[#allocation0]]
  $region45: #{tpu_custom_call.1} parent=0
    _
  %s5 = ssub.s32 1, %s3
  %s6 = scalar_select 0, %s5, %s3
  loop: start=0, step=1, limit=6
  $region2: #{tpu_custom_call.1} parent=0 // loop_pre_header
    _
  $region3: #{tpu_custom_call.1} parent=0 // loop_header
    %s8 = sphi 0, %s12
    %p9 = scmp.ge.s32.totalorder %s8, 6
    %s15 = sphi 0, %s27
    %s16 = sphi 0, %s23
    %s17 = sphi 0, %s15
    %s18 = sphi 0, %s16
    %s19 = sphi 0, %s17
    %s20 = sphi 0, %s18
    %s38 = sphi 0, %s40
    %s41 = sphi 0, %s38
    %s42 = sphi 0, %s41
    %s58 = sphi 0, %s42
    %s72 = sphi 0, %s74
    %s75 = sphi 0, %s72
    %s76 = sphi 0, %s75
    %s92 = sphi 0, %s76
    %s98 = sphi 0, %s100
    %s101 = sphi 0, %s98
    %s102 = sphi 0, %s101
    %s118 = sphi 0, %s102
  $region4: #{tpu_custom_call.1} parent=0 // loop_header_branch
    %11 = sbr.rel (%p9) target = $region8
  $region5: #{tpu_custom_call.1} parent=0 // loop_body
    %s13 = ssub.s32 %s8, 1
    %s14 = ssub.s32 %s8, 2
    %s21 = sadd.s32 1, %s16
    %p22 = scmp.ge.s32.totalorder %s21, 2
    %s23 = scalar_select %p22, 0, %s21
    %s24 = sadd.s32 1, %s15
    %s25 = scalar_select %p22, %s24, %s15
    %p26 = scmp.ge.s32.totalorder %s25, 2
    %s27 = scalar_select %p26, 0, %s25
    %s28 = smul.u32 %s15, 2
    %s29 = sadd.s32 %s28, %s16
    %p30 = scmp.lt.s32.totalorder %s29, 2
    %s31 = scalar_select %p30, %s29, 2
    %s32 = smul.u32 %s27, 2
    %s33 = sadd.s32 %s32, %s23
    %p34 = scmp.lt.s32.totalorder %s33, 2
    %s35 = scalar_select %p34, %s33, 2
    %s36 = ssub.s32 %s31, %s35
    %p37 = scmp.eq.s32.totalorder %s36, 0
    %s39 = sadd.s32 %s38, 1
    %s40 = scalar_select %p37, %s38, %s39
    %p43 = pneg %p37
    %p44 = scmp.eq.s32.totalorder %s8, 3
    %p45 = por %p43, %p44
    %p46 = scmp.ne.s32.totalorder %s38, %s41
    %p47 = scmp.eq.s32.totalorder %s8, 0
    %p48 = por %p46, %p47
    %p49 = scmp.ne.s32.totalorder %s38, %s41
    %p50 = scmp.eq.s32.totalorder %s13, 3
    %p51 = por %p49, %p50
    %p52 = scmp.ne.s32.totalorder %s41, %s42
    %p53 = scmp.eq.s32.totalorder %s13, 0
    %p54 = por %p52, %p53
    %p55 = scmp.ne.s32.totalorder %s41, %s42
    %p56 = scmp.eq.s32.totalorder %s14, 3
    %p57 = por %p55, %p56
    %p59 = scmp.ne.s32.totalorder %s42, %s58
    %p60 = scmp.eq.s32.totalorder %s14, 0
    %p61 = por %p59, %p60
    %s62 = smul.u32 %s15, 2
    %s63 = sadd.s32 %s62, %s16
    %p64 = scmp.lt.s32.totalorder %s63, 2
    %s65 = scalar_select %p64, %s63, 2
    %s66 = smul.u32 %s27, 2
    %s67 = sadd.s32 %s66, %s23
    %p68 = scmp.lt.s32.totalorder %s67, 2
    %s69 = scalar_select %p68, %s67, 2
    %s70 = ssub.s32 %s65, %s69
    %p71 = scmp.eq.s32.totalorder %s70, 0
    %s73 = sadd.s32 %s72, 1
    %s74 = scalar_select %p71, %s72, %s73
    %p77 = pneg %p71
    %p78 = scmp.eq.s32.totalorder %s8, 3
    %p79 = por %p77, %p78
    %p80 = scmp.ne.s32.totalorder %s72, %s75
    %p81 = scmp.eq.s32.totalorder %s8, 0
    %p82 = por %p80, %p81
    %p83 = scmp.ne.s32.totalorder %s72, %s75
    %p84 = scmp.eq.s32.totalorder %s13, 3
    %p85 = por %p83, %p84
    %p86 = scmp.ne.s32.totalorder %s75, %s76
    %p87 = scmp.eq.s32.totalorder %s13, 0
    %p88 = por %p86, %p87
    %p89 = scmp.ne.s32.totalorder %s75, %s76
    %p90 = scmp.eq.s32.totalorder %s14, 3
    %p91 = por %p89, %p90
    %p93 = scmp.ne.s32.totalorder %s76, %s92
    %p94 = scmp.eq.s32.totalorder %s14, 0
    %p95 = por %p93, %p94
    %s96 = ssub.s32 %s15, %s27
    %p97 = scmp.eq.s32.totalorder %s96, 0
    %s99 = sadd.s32 %s98, 1
    %s100 = scalar_select %p97, %s98, %s99
    %p103 = pneg %p97
    %p104 = scmp.eq.s32.totalorder %s8, 3
    %p105 = por %p103, %p104
    %p106 = scmp.ne.s32.totalorder %s98, %s101
    %p107 = scmp.eq.s32.totalorder %s8, 0
    %p108 = por %p106, %p107
    %p109 = scmp.ne.s32.totalorder %s98, %s101
    %p110 = scmp.eq.s32.totalorder %s13, 3
    %p111 = por %p109, %p110
    %p112 = scmp.ne.s32.totalorder %s101, %s102
    %p113 = scmp.eq.s32.totalorder %s13, 0
    %p114 = por %p112, %p113
    %p115 = scmp.ne.s32.totalorder %s101, %s102
    %p116 = scmp.eq.s32.totalorder %s14, 3
    %p117 = por %p115, %p116
    %p119 = scmp.ne.s32.totalorder %s102, %s118
    %p120 = scmp.eq.s32.totalorder %s14, 0
    %p121 = por %p119, %p120
    %p122 = scmp.le.s32.totalorder 1, %s8
    %p123 = scmp.lt.s32.totalorder %s8, 5
    %p124 = pnand %p122, %p123
    %p125 = pneg %p124
    // Predicated region
    $region9: #{tpu_custom_call.1} parent=5 // pred_check
      _
    $region10: #{tpu_custom_call.1} parent=5 // pred_check_branch
      %127 = sbr.rel (%p124) target = $region12
    $region11: #{tpu_custom_call.1} parent=5 // pred_region
      %s128 = ssub.s32 %s8, 1
    $region12: #{tpu_custom_call.1} parent=5 // pred_fallthru
      _
    %p129 = scmp.lt.s32.totalorder %s8, 4
    // Predicated region
    $region13: #{tpu_custom_call.1} parent=5 // pred_check
      %p130 = pneg %p129
    $region14: #{tpu_custom_call.1} parent=5 // pred_check_branch
      %132 = sbr.rel (%p130) target = $region16
    $region15: #{tpu_custom_call.1} parent=5 // pred_region
      // Predicated region
      $region17: #{tpu_custom_call.1} parent=15 // pred_check
        %p133 = pneg %p48
      $region18: #{tpu_custom_call.1} parent=15 // pred_check_branch
        %135 = sbr.rel (%p133) target = $region20
      $region19: #{tpu_custom_call.1} parent=15 // pred_region
        %s136 = smul.u32 %s15, 2
        %s137 = sadd.s32 %s136, %s16
        %p138 = scmp.lt.s32.totalorder %s137, 2
        %s139 = scalar_select %p138, %s137, 2
        %s140 = smul.u32 16, %s139
        %s141 = ssub.s32 38, %s140
        %p142 = scmp.lt.s32.totalorder %s141, 16
        %s143 = scalar_select %p142, %s141, 16
        %s144 = smul.u32 128, %s143
        %p145 = scmp.lt.s32.totalorder %s140, 37
        %s146 = scalar_select %p145, %s140, 37
        %s147 = smul.addr %s146, 8
        %s148 = scalar_lea.vmem %s0, %s147
        %s149 = smul.u32 %s15, 2
        %s150 = sadd.s32 %s149, %s16
        %p151 = scmp.lt.s32.totalorder %s150, 2
        %s152 = scalar_select %p151, %s150, 2
        %s153 = smul.u32 16, %s152
        %s154 = ssub.s32 38, %s153
        %p155 = scmp.lt.s32.totalorder %s154, 16
        %s156 = scalar_select %p155, %s154, 16
        %s157 = smul.u32 128, %s156
      $region20: #{tpu_custom_call.1} parent=15 // pred_fallthru
        _
      // Predicated region
      $region21: #{tpu_custom_call.1} parent=15 // pred_check
        %p158 = pneg %p82
      $region22: #{tpu_custom_call.1} parent=15 // pred_check_branch
        %160 = sbr.rel (%p158) target = $region24
      $region23: #{tpu_custom_call.1} parent=15 // pred_region
        %s161 = smul.u32 %s15, 2
        %s162 = sadd.s32 %s161, %s16
        %p163 = scmp.lt.s32.totalorder %s162, 2
        %s164 = scalar_select %p163, %s162, 2
        %s165 = smul.u32 16, %s164
        %s166 = ssub.s32 38, %s165
        %p167 = scmp.lt.s32.totalorder %s166, 16
        %s168 = scalar_select %p167, %s166, 16
        %s169 = smul.u32 128, %s168
        %p170 = scmp.lt.s32.totalorder %s165, 37
        %s171 = scalar_select %p170, %s165, 37
        %s172 = smul.addr %s171, 8
        %s173 = scalar_lea.vmem %s1, %s172
        %s174 = smul.u32 %s15, 2
        %s175 = sadd.s32 %s174, %s16
        %p176 = scmp.lt.s32.totalorder %s175, 2
        %s177 = scalar_select %p176, %s175, 2
        %s178 = smul.u32 16, %s177
        %s179 = ssub.s32 38, %s178
        %p180 = scmp.lt.s32.totalorder %s179, 16
        %s181 = scalar_select %p180, %s179, 16
        %s182 = smul.u32 128, %s181
      $region24: #{tpu_custom_call.1} parent=15 // pred_fallthru
        _
    $region16: #{tpu_custom_call.1} parent=5 // pred_fallthru
      _
    %p183 = scmp.le.s32.totalorder 1, %s8
    %p184 = scmp.lt.s32.totalorder %s8, 5
    %p185 = pnand %p183, %p184
    %p186 = pneg %p185
    // Predicated region
    $region25: #{tpu_custom_call.1} parent=5 // pred_check
      _
    $region26: #{tpu_custom_call.1} parent=5 // pred_check_branch
      %188 = sbr.rel (%p185) target = $region28
    $region27: #{tpu_custom_call.1} parent=5 // pred_region
      %s189 = ssub.s32 %s8, 1
      %s190 = smul.u32 %s17, 2
      %s191 = sadd.s32 %s190, %s18
      %p192 = scmp.lt.s32.totalorder %s191, 2
      %s193 = scalar_select %p192, %s191, 2
      %s194 = smul.u32 16, %s193
      %s195 = ssub.s32 38, %s194
      %p196 = scmp.lt.s32.totalorder %s195, 16
      %s197 = scalar_select %p196, %s195, 16
      %s198 = smul.u32 128, %s197
      %p199 = scmp.lt.s32.totalorder %s194, 37
      %s200 = scalar_select %p199, %s194, 37
      %s201 = smul.addr %s200, 8
      %s202 = scalar_lea.vmem %s0, %s201
      %p203 = pneg %p54
      %p204 = pneg %p51
      %s205 = smul.u32 %s17, 2
      %s206 = sadd.s32 %s205, %s18
      %p207 = scmp.lt.s32.totalorder %s206, 2
      %s208 = scalar_select %p207, %s206, 2
      %s209 = smul.u32 16, %s208
      %s210 = ssub.s32 38, %s209
      %p211 = scmp.lt.s32.totalorder %s210, 16
      %s212 = scalar_select %p211, %s210, 16
      %s213 = smul.u32 128, %s212
      %p214 = scmp.lt.s32.totalorder %s209, 37
      %s215 = scalar_select %p214, %s209, 37
      %s216 = smul.addr %s215, 8
      %s217 = scalar_lea.vmem %s1, %s216
      %p218 = pneg %p88
      %p219 = pneg %p85
      %p220 = pneg %p114
      %p221 = pneg %p111
      %p222 = scmp.lt.s32.totalorder %s17, 1
      %s223 = scalar_select %p222, %s17, 1
      %s224 = smul.addr %s223, 4
      %s225 = scalar_lea.vmem %s2, %s224
      %s226 = smul.u32 %s17, 2
      %s227 = sadd.s32 %s226, %s18
      %p228 = scmp.lt.s32.totalorder %s227, 2
      %s229 = scalar_select %p228, %s227, 2
      %s230 = smul.u32 16, %s229
      %s231 = ssub.s32 38, %s230
      %p232 = scmp.lt.s32.totalorder %s231, 16
      %s233 = scalar_select %p232, %s231, 16
      %s234 = smul.u32 128, %s233
      %p235 = scmp.lt.s32.totalorder %s230, 37
      %s236 = scalar_select %p235, %s230, 37
      %s237 = smul.addr %s236, 8
      %s238 = scalar_lea.vmem %s0, %s237
      %s239 = smul.u32 %s17, 2
      %s240 = sadd.s32 %s239, %s18
      %p241 = scmp.lt.s32.totalorder %s240, 2
      %s242 = scalar_select %p241, %s240, 2
      %s243 = smul.u32 16, %s242
      %s244 = ssub.s32 38, %s243
      %p245 = scmp.lt.s32.totalorder %s244, 16
      %s246 = scalar_select %p245, %s244, 16
      %s247 = smul.u32 128, %s246
      %s248 = smul.u32 %s17, 2
      %s249 = sadd.s32 %s248, %s18
      %p250 = scmp.lt.s32.totalorder %s249, 2
      %s251 = scalar_select %p250, %s249, 2
      %s252 = smul.u32 16, %s251
      %s253 = ssub.s32 38, %s252
      %p254 = scmp.lt.s32.totalorder %s253, 16
      %s255 = scalar_select %p254, %s253, 16
      %s256 = smul.u32 128, %s255
      %p257 = scmp.lt.s32.totalorder %s252, 37
      %s258 = scalar_select %p257, %s252, 37
      %s259 = smul.addr %s258, 8
      %s260 = scalar_lea.vmem %s1, %s259
      %s261 = smul.u32 %s17, 2
      %s262 = sadd.s32 %s261, %s18
      %p263 = scmp.lt.s32.totalorder %s262, 2
      %s264 = scalar_select %p263, %s262, 2
      %s265 = smul.u32 16, %s264
      %s266 = ssub.s32 38, %s265
      %p267 = scmp.lt.s32.totalorder %s266, 16
      %s268 = scalar_select %p267, %s266, 16
      %s269 = smul.u32 128, %s268
      %p270 = scmp.lt.s32.totalorder %s17, 1
      %s271 = scalar_select %p270, %s17, 1
      %s272 = smul.addr %s271, 4
      %s273 = scalar_lea.vmem %s2, %s272
      %p274 = scmp.eq.s32.totalorder %s18, 0
      // Predicated region
      $region29: #{tpu_custom_call.1} parent=27 // pred_check
        %p275 = pneg %p274
      $region30: #{tpu_custom_call.1} parent=27 // pred_check_branch
        %277 = sbr.rel (%p275) target = $region32
      $region31: #{tpu_custom_call.1} parent=27 // pred_region
        %vm278 = vcmask 75776
        %279 = vst.msk [vmem:[%s273] sm:$0x7] %vm278, 0.0
      $region32: #{tpu_custom_call.1} parent=27 // pred_fallthru
        _
      %v280 = vld [vmem:[%s238] sm:$0xff]
      %v281 = vld [vmem:[%s238 + $0x8] sm:$0xff]
      %v282 = vld [vmem:[%s238 + $0x10] sm:$0xff]
      %v283 = vld [vmem:[%s238 + $0x18] sm:$0xff]
      %v284 = vld [vmem:[%s238 + $0x20] sm:$0xff]
      %v285 = vld [vmem:[%s238 + $0x28] sm:$0xff]
      %v286 = vld [vmem:[%s238 + $0x30] sm:$0xff]
      %v287 = vld [vmem:[%s238 + $0x38] sm:$0xff]
      %v288 = vld [vmem:[%s238 + $0x40] sm:$0xff]
      %v289 = vld [vmem:[%s238 + $0x48] sm:$0xff]
      %v290 = vld [vmem:[%s238 + $0x50] sm:$0xff]
      %v291 = vld [vmem:[%s238 + $0x58] sm:$0xff]
      %v292 = vld [vmem:[%s238 + $0x60] sm:$0xff]
      %v293 = vld [vmem:[%s238 + $0x68] sm:$0xff]
      %v294 = vld [vmem:[%s238 + $0x70] sm:$0xff]
      %v295 = vld [vmem:[%s238 + $0x78] sm:$0xff]
      %vm296 = vcmask 130048
      %v297 = vsel %vm296, %v280, -inf
      %298 = vmax.xlane.f32.xlu0 %v297
      %v299 = vpop.xlane.xlu0 %298
      %v300 = vsel %vm296, %v281, -inf
      %301 = vmax.xlane.f32.xlu0 %v300
      %v302 = vpop.xlane.xlu0 %301
      %v303 = vsel %vm296, %v282, -inf
      %304 = vmax.xlane.f32.xlu0 %v303
      %v305 = vpop.xlane.xlu0 %304
      %v306 = vsel %vm296, %v283, -inf
      %307 = vmax.xlane.f32.xlu0 %v306
      %v308 = vpop.xlane.xlu0 %307
      %v309 = vsel %vm296, %v284, -inf
      %310 = vmax.xlane.f32.xlu0 %v309
      %v311 = vpop.xlane.xlu0 %310
      %v312 = vsel %vm296, %v285, -inf
      %313 = vmax.xlane.f32.xlu0 %v312
      %v314 = vpop.xlane.xlu0 %313
      %v315 = vsel %vm296, %v286, -inf
      %316 = vmax.xlane.f32.xlu0 %v315
      %v317 = vpop.xlane.xlu0 %316
      %v318 = vsel %vm296, %v287, -inf
      %319 = vmax.xlane.f32.xlu0 %v318
      %v320 = vpop.xlane.xlu0 %319
      %v321 = vsel %vm296, %v288, -inf
      %322 = vmax.xlane.f32.xlu0 %v321
      %v323 = vpop.xlane.xlu0 %322
      %v324 = vsel %vm296, %v289, -inf
      %325 = vmax.xlane.f32.xlu0 %v324
      %v326 = vpop.xlane.xlu0 %325
      %v327 = vsel %vm296, %v290, -inf
      %328 = vmax.xlane.f32.xlu0 %v327
      %v329 = vpop.xlane.xlu0 %328
      %v330 = vsel %vm296, %v291, -inf
      %331 = vmax.xlane.f32.xlu0 %v330
      %v332 = vpop.xlane.xlu0 %331
      %v333 = vsel %vm296, %v292, -inf
      %334 = vmax.xlane.f32.xlu0 %v333
      %v335 = vpop.xlane.xlu0 %334
      %v336 = vsel %vm296, %v293, -inf
      %337 = vmax.xlane.f32.xlu0 %v336
      %v338 = vpop.xlane.xlu0 %337
      %v339 = vsel %vm296, %v294, -inf
      %340 = vmax.xlane.f32.xlu0 %v339
      %v341 = vpop.xlane.xlu0 %340
      %v342 = vsel %vm296, %v295, -inf
      %343 = vmax.xlane.f32.xlu0 %v342
      %v344 = vpop.xlane.xlu0 %343
      %v345 = vsub.f32 %v280, %v299
      %v346 = vsub.f32 %v281, %v302
      %v347 = vsub.f32 %v282, %v305
      %v348 = vsub.f32 %v283, %v308
      %v349 = vsub.f32 %v284, %v311
      %v350 = vsub.f32 %v285, %v314
      %v351 = vsub.f32 %v286, %v317
      %v352 = vsub.f32 %v287, %v320
      %v353 = vsub.f32 %v288, %v323
      %v354 = vsub.f32 %v289, %v326
      %v355 = vsub.f32 %v290, %v329
      %v356 = vsub.f32 %v291, %v332
      %v357 = vsub.f32 %v292, %v335
      %v358 = vsub.f32 %v293, %v338
      %v359 = vsub.f32 %v294, %v341
      %v360 = vsub.f32 %v295, %v344
      %v361 = vmul.f32 %v345, 1.442695
      %v362 = vpow.pop %v361
      %v363 = vmul.f32 %v346, 1.442695
      %v364 = vpow.pop %v363
      %v365 = vmul.f32 %v347, 1.442695
      %v366 = vpow.pop %v365
      %v367 = vmul.f32 %v348, 1.442695
      %v368 = vpow.pop %v367
      %v369 = vmul.f32 %v349, 1.442695
      %v370 = vpow.pop %v369
      %v371 = vmul.f32 %v350, 1.442695
      %v372 = vpow.pop %v371
      %v373 = vmul.f32 %v351, 1.442695
      %v374 = vpow.pop %v373
      %v375 = vmul.f32 %v352, 1.442695
      %v376 = vpow.pop %v375
      %v377 = vmul.f32 %v353, 1.442695
      %v378 = vpow.pop %v377
      %v379 = vmul.f32 %v354, 1.442695
      %v380 = vpow.pop %v379
      %v381 = vmul.f32 %v355, 1.442695
      %v382 = vpow.pop %v381
      %v383 = vmul.f32 %v356, 1.442695
      %v384 = vpow.pop %v383
      %v385 = vmul.f32 %v357, 1.442695
      %v386 = vpow.pop %v385
      %v387 = vmul.f32 %v358, 1.442695
      %v388 = vpow.pop %v387
      %v389 = vmul.f32 %v359, 1.442695
      %v390 = vpow.pop %v389
      %v391 = vmul.f32 %v360, 1.442695
      %v392 = vpow.pop %v391
      %v393 = vsel %vm296, %v362, 0.0
      %394 = vadd.xlane.f32.xlu0 %v393
      %v395 = vpop.xlane.xlu0 %394
      %v396 = vsel %vm296, %v364, 0.0
      %397 = vadd.xlane.f32.xlu0 %v396
      %v398 = vpop.xlane.xlu0 %397
      %v399 = vsel %vm296, %v366, 0.0
      %400 = vadd.xlane.f32.xlu0 %v399
      %v401 = vpop.xlane.xlu0 %400
      %v402 = vsel %vm296, %v368, 0.0
      %403 = vadd.xlane.f32.xlu0 %v402
      %v404 = vpop.xlane.xlu0 %403
      %v405 = vsel %vm296, %v370, 0.0
      %406 = vadd.xlane.f32.xlu0 %v405
      %v407 = vpop.xlane.xlu0 %406
      %v408 = vsel %vm296, %v372, 0.0
      %409 = vadd.xlane.f32.xlu0 %v408
      %v410 = vpop.xlane.xlu0 %409
      %v411 = vsel %vm296, %v374, 0.0
      %412 = vadd.xlane.f32.xlu0 %v411
      %v413 = vpop.xlane.xlu0 %412
      %v414 = vsel %vm296, %v376, 0.0
      %415 = vadd.xlane.f32.xlu0 %v414
      %v416 = vpop.xlane.xlu0 %415
      %v417 = vsel %vm296, %v378, 0.0
      %418 = vadd.xlane.f32.xlu0 %v417
      %v419 = vpop.xlane.xlu0 %418
      %v420 = vsel %vm296, %v380, 0.0
      %421 = vadd.xlane.f32.xlu0 %v420
      %v422 = vpop.xlane.xlu0 %421
      %v423 = vsel %vm296, %v382, 0.0
      %424 = vadd.xlane.f32.xlu0 %v423
      %v425 = vpop.xlane.xlu0 %424
      %v426 = vsel %vm296, %v384, 0.0
      %427 = vadd.xlane.f32.xlu0 %v426
      %v428 = vpop.xlane.xlu0 %427
      %v429 = vsel %vm296, %v386, 0.0
      %430 = vadd.xlane.f32.xlu0 %v429
      %v431 = vpop.xlane.xlu0 %430
      %v432 = vsel %vm296, %v388, 0.0
      %433 = vadd.xlane.f32.xlu0 %v432
      %v434 = vpop.xlane.xlu0 %433
      %v435 = vsel %vm296, %v390, 0.0
      %436 = vadd.xlane.f32.xlu0 %v435
      %v437 = vpop.xlane.xlu0 %436
      %v438 = vsel %vm296, %v392, 0.0
      %439 = vadd.xlane.f32.xlu0 %v438
      %v440 = vpop.xlane.xlu0 %439
      %v441 = vlaneseq
      %v442 = vand.u32 %v441, 127
      %vm443 = vcmp.eq.f32.partialorder %v280, %v299
      %vm444 = vcmp.eq.f32.partialorder %v281, %v302
      %vm445 = vcmp.eq.f32.partialorder %v282, %v305
      %vm446 = vcmp.eq.f32.partialorder %v283, %v308
      %vm447 = vcmp.eq.f32.partialorder %v284, %v311
      %vm448 = vcmp.eq.f32.partialorder %v285, %v314
      %vm449 = vcmp.eq.f32.partialorder %v286, %v317
      %vm450 = vcmp.eq.f32.partialorder %v287, %v320
      %vm451 = vcmp.eq.f32.partialorder %v288, %v323
      %vm452 = vcmp.eq.f32.partialorder %v289, %v326
      %vm453 = vcmp.eq.f32.partialorder %v290, %v329
      %vm454 = vcmp.eq.f32.partialorder %v291, %v332
      %vm455 = vcmp.eq.f32.partialorder %v292, %v335
      %vm456 = vcmp.eq.f32.partialorder %v293, %v338
      %vm457 = vcmp.eq.f32.partialorder %v294, %v341
      %vm458 = vcmp.eq.f32.partialorder %v295, %v344
      %v459 = vsel %vm443, %v442, 16
      %v460 = vsel %vm444, %v442, 16
      %v461 = vsel %vm445, %v442, 16
      %v462 = vsel %vm446, %v442, 16
      %v463 = vsel %vm447, %v442, 16
      %v464 = vsel %vm448, %v442, 16
      %v465 = vsel %vm449, %v442, 16
      %v466 = vsel %vm450, %v442, 16
      %v467 = vsel %vm451, %v442, 16
      %v468 = vsel %vm452, %v442, 16
      %v469 = vsel %vm453, %v442, 16
      %v470 = vsel %vm454, %v442, 16
      %v471 = vsel %vm455, %v442, 16
      %v472 = vsel %vm456, %v442, 16
      %v473 = vsel %vm457, %v442, 16
      %v474 = vsel %vm458, %v442, 16
      %v475 = vsel %vm296, %v459, 2147483647
      %v476 = vand.u32 %v475, 65535
      %v477 = vshra.s32 %v475, 16
      %v478 = vcvt.s32.f32 %v476
      %v479 = vcvt.s32.f32 %v477
      %480 = vmin.xlane.f32.xlu0 %v479
      %v481 = vpop.xlane.xlu0 %480
      %vm482 = vcmp.eq.f32.partialorder %v479, %v481
      %v483 = vsel %vm482, %v478, inf
      %484 = vmin.xlane.f32.xlu0 %v483
      %v485 = vpop.xlane.xlu0 %484
      %v486 = vcvt.f32.s32 %v485
      %v487 = vcvt.f32.s32 %v481
      %v488 = vshll.u32 %v487, 16
      %v489 = vadd.s32 %v488, %v486
      %v490 = vsel %vm296, %v460, 2147483647
      %v491 = vand.u32 %v490, 65535
      %v492 = vshra.s32 %v490, 16
      %v493 = vcvt.s32.f32 %v491
      %v494 = vcvt.s32.f32 %v492
      %495 = vmin.xlane.f32.xlu0 %v494
      %v496 = vpop.xlane.xlu0 %495
      %vm497 = vcmp.eq.f32.partialorder %v494, %v496
      %v498 = vsel %vm497, %v493, inf
      %499 = vmin.xlane.f32.xlu0 %v498
      %v500 = vpop.xlane.xlu0 %499
      %v501 = vcvt.f32.s32 %v500
      %v502 = vcvt.f32.s32 %v496
      %v503 = vshll.u32 %v502, 16
      %v504 = vadd.s32 %v503, %v501
      %v505 = vsel %vm296, %v461, 2147483647
      %v506 = vand.u32 %v505, 65535
      %v507 = vshra.s32 %v505, 16
      %v508 = vcvt.s32.f32 %v506
      %v509 = vcvt.s32.f32 %v507
      %510 = vmin.xlane.f32.xlu0 %v509
      %v511 = vpop.xlane.xlu0 %510
      %vm512 = vcmp.eq.f32.partialorder %v509, %v511
      %v513 = vsel %vm512, %v508, inf
      %514 = vmin.xlane.f32.xlu0 %v513
      %v515 = vpop.xlane.xlu0 %514
      %v516 = vcvt.f32.s32 %v515
      %v517 = vcvt.f32.s32 %v511
      %v518 = vshll.u32 %v517, 16
      %v519 = vadd.s32 %v518, %v516
      %v520 = vsel %vm296, %v462, 2147483647
      %v521 = vand.u32 %v520, 65535
      %v522 = vshra.s32 %v520, 16
      %v523 = vcvt.s32.f32 %v521
      %v524 = vcvt.s32.f32 %v522
      %525 = vmin.xlane.f32.xlu0 %v524
      %v526 = vpop.xlane.xlu0 %525
      %vm527 = vcmp.eq.f32.partialorder %v524, %v526
      %v528 = vsel %vm527, %v523, inf
      %529 = vmin.xlane.f32.xlu0 %v528
      %v530 = vpop.xlane.xlu0 %529
      %v531 = vcvt.f32.s32 %v530
      %v532 = vcvt.f32.s32 %v526
      %v533 = vshll.u32 %v532, 16
      %v534 = vadd.s32 %v533, %v531
      %v535 = vsel %vm296, %v463, 2147483647
      %v536 = vand.u32 %v535, 65535
      %v537 = vshra.s32 %v535, 16
      %v538 = vcvt.s32.f32 %v536
      %v539 = vcvt.s32.f32 %v537
      %540 = vmin.xlane.f32.xlu0 %v539
      %v541 = vpop.xlane.xlu0 %540
      %vm542 = vcmp.eq.f32.partialorder %v539, %v541
      %v543 = vsel %vm542, %v538, inf
      %544 = vmin.xlane.f32.xlu0 %v543
      %v545 = vpop.xlane.xlu0 %544
      %v546 = vcvt.f32.s32 %v545
      %v547 = vcvt.f32.s32 %v541
      %v548 = vshll.u32 %v547, 16
      %v549 = vadd.s32 %v548, %v546
      %v550 = vsel %vm296, %v464, 2147483647
      %v551 = vand.u32 %v550, 65535
      %v552 = vshra.s32 %v550, 16
      %v553 = vcvt.s32.f32 %v551
      %v554 = vcvt.s32.f32 %v552
      %555 = vmin.xlane.f32.xlu0 %v554
      %v556 = vpop.xlane.xlu0 %555
      %vm557 = vcmp.eq.f32.partialorder %v554, %v556
      %v558 = vsel %vm557, %v553, inf
      %559 = vmin.xlane.f32.xlu0 %v558
      %v560 = vpop.xlane.xlu0 %559
      %v561 = vcvt.f32.s32 %v560
      %v562 = vcvt.f32.s32 %v556
      %v563 = vshll.u32 %v562, 16
      %v564 = vadd.s32 %v563, %v561
      %v565 = vsel %vm296, %v465, 2147483647
      %v566 = vand.u32 %v565, 65535
      %v567 = vshra.s32 %v565, 16
      %v568 = vcvt.s32.f32 %v566
      %v569 = vcvt.s32.f32 %v567
      %570 = vmin.xlane.f32.xlu0 %v569
      %v571 = vpop.xlane.xlu0 %570
      %vm572 = vcmp.eq.f32.partialorder %v569, %v571
      %v573 = vsel %vm572, %v568, inf
      %574 = vmin.xlane.f32.xlu0 %v573
      %v575 = vpop.xlane.xlu0 %574
      %v576 = vcvt.f32.s32 %v575
      %v577 = vcvt.f32.s32 %v571
      %v578 = vshll.u32 %v577, 16
      %v579 = vadd.s32 %v578, %v576
      %v580 = vsel %vm296, %v466, 2147483647
      %v581 = vand.u32 %v580, 65535
      %v582 = vshra.s32 %v580, 16
      %v583 = vcvt.s32.f32 %v581
      %v584 = vcvt.s32.f32 %v582
      %585 = vmin.xlane.f32.xlu0 %v584
      %v586 = vpop.xlane.xlu0 %585
      %vm587 = vcmp.eq.f32.partialorder %v584, %v586
      %v588 = vsel %vm587, %v583, inf
      %589 = vmin.xlane.f32.xlu0 %v588
      %v590 = vpop.xlane.xlu0 %589
      %v591 = vcvt.f32.s32 %v590
      %v592 = vcvt.f32.s32 %v586
      %v593 = vshll.u32 %v592, 16
      %v594 = vadd.s32 %v593, %v591
      %v595 = vsel %vm296, %v467, 2147483647
      %v596 = vand.u32 %v595, 65535
      %v597 = vshra.s32 %v595, 16
      %v598 = vcvt.s32.f32 %v596
      %v599 = vcvt.s32.f32 %v597
      %600 = vmin.xlane.f32.xlu0 %v599
      %v601 = vpop.xlane.xlu0 %600
      %vm602 = vcmp.eq.f32.partialorder %v599, %v601
      %v603 = vsel %vm602, %v598, inf
      %604 = vmin.xlane.f32.xlu0 %v603
      %v605 = vpop.xlane.xlu0 %604
      %v606 = vcvt.f32.s32 %v605
      %v607 = vcvt.f32.s32 %v601
      %v608 = vshll.u32 %v607, 16
      %v609 = vadd.s32 %v608, %v606
      %v610 = vsel %vm296, %v468, 2147483647
      %v611 = vand.u32 %v610, 65535
      %v612 = vshra.s32 %v610, 16
      %v613 = vcvt.s32.f32 %v611
      %v614 = vcvt.s32.f32 %v612
      %615 = vmin.xlane.f32.xlu0 %v614
      %v616 = vpop.xlane.xlu0 %615
      %vm617 = vcmp.eq.f32.partialorder %v614, %v616
      %v618 = vsel %vm617, %v613, inf
      %619 = vmin.xlane.f32.xlu0 %v618
      %v620 = vpop.xlane.xlu0 %619
      %v621 = vcvt.f32.s32 %v620
      %v622 = vcvt.f32.s32 %v616
      %v623 = vshll.u32 %v622, 16
      %v624 = vadd.s32 %v623, %v621
      %v625 = vsel %vm296, %v469, 2147483647
      %v626 = vand.u32 %v625, 65535
      %v627 = vshra.s32 %v625, 16
      %v628 = vcvt.s32.f32 %v626
      %v629 = vcvt.s32.f32 %v627
      %630 = vmin.xlane.f32.xlu0 %v629
      %v631 = vpop.xlane.xlu0 %630
      %vm632 = vcmp.eq.f32.partialorder %v629, %v631
      %v633 = vsel %vm632, %v628, inf
      %634 = vmin.xlane.f32.xlu0 %v633
      %v635 = vpop.xlane.xlu0 %634
      %v636 = vcvt.f32.s32 %v635
      %v637 = vcvt.f32.s32 %v631
      %v638 = vshll.u32 %v637, 16
      %v639 = vadd.s32 %v638, %v636
      %v640 = vsel %vm296, %v470, 2147483647
      %v641 = vand.u32 %v640, 65535
      %v642 = vshra.s32 %v640, 16
      %v643 = vcvt.s32.f32 %v641
      %v644 = vcvt.s32.f32 %v642
      %645 = vmin.xlane.f32.xlu0 %v644
      %v646 = vpop.xlane.xlu0 %645
      %vm647 = vcmp.eq.f32.partialorder %v644, %v646
      %v648 = vsel %vm647, %v643, inf
      %649 = vmin.xlane.f32.xlu0 %v648
      %v650 = vpop.xlane.xlu0 %649
      %v651 = vcvt.f32.s32 %v650
      %v652 = vcvt.f32.s32 %v646
      %v653 = vshll.u32 %v652, 16
      %v654 = vadd.s32 %v653, %v651
      %v655 = vsel %vm296, %v471, 2147483647
      %v656 = vand.u32 %v655, 65535
      %v657 = vshra.s32 %v655, 16
      %v658 = vcvt.s32.f32 %v656
      %v659 = vcvt.s32.f32 %v657
      %660 = vmin.xlane.f32.xlu0 %v659
      %v661 = vpop.xlane.xlu0 %660
      %vm662 = vcmp.eq.f32.partialorder %v659, %v661
      %v663 = vsel %vm662, %v658, inf
      %664 = vmin.xlane.f32.xlu0 %v663
      %v665 = vpop.xlane.xlu0 %664
      %v666 = vcvt.f32.s32 %v665
      %v667 = vcvt.f32.s32 %v661
      %v668 = vshll.u32 %v667, 16
      %v669 = vadd.s32 %v668, %v666
      %v670 = vsel %vm296, %v472, 2147483647
      %v671 = vand.u32 %v670, 65535
      %v672 = vshra.s32 %v670, 16
      %v673 = vcvt.s32.f32 %v671
      %v674 = vcvt.s32.f32 %v672
      %675 = vmin.xlane.f32.xlu0 %v674
      %v676 = vpop.xlane.xlu0 %675
      %vm677 = vcmp.eq.f32.partialorder %v674, %v676
      %v678 = vsel %vm677, %v673, inf
      %679 = vmin.xlane.f32.xlu0 %v678
      %v680 = vpop.xlane.xlu0 %679
      %v681 = vcvt.f32.s32 %v680
      %v682 = vcvt.f32.s32 %v676
      %v683 = vshll.u32 %v682, 16
      %v684 = vadd.s32 %v683, %v681
      %v685 = vsel %vm296, %v473, 2147483647
      %v686 = vand.u32 %v685, 65535
      %v687 = vshra.s32 %v685, 16
      %v688 = vcvt.s32.f32 %v686
      %v689 = vcvt.s32.f32 %v687
      %690 = vmin.xlane.f32.xlu0 %v689
      %v691 = vpop.xlane.xlu0 %690
      %vm692 = vcmp.eq.f32.partialorder %v689, %v691
      %v693 = vsel %vm692, %v688, inf
      %694 = vmin.xlane.f32.xlu0 %v693
      %v695 = vpop.xlane.xlu0 %694
      %v696 = vcvt.f32.s32 %v695
      %v697 = vcvt.f32.s32 %v691
      %v698 = vshll.u32 %v697, 16
      %v699 = vadd.s32 %v698, %v696
      %v700 = vsel %vm296, %v474, 2147483647
      %v701 = vand.u32 %v700, 65535
      %v702 = vshra.s32 %v700, 16
      %v703 = vcvt.s32.f32 %v701
      %v704 = vcvt.s32.f32 %v702
      %705 = vmin.xlane.f32.xlu0 %v704
      %v706 = vpop.xlane.xlu0 %705
      %vm707 = vcmp.eq.f32.partialorder %v704, %v706
      %v708 = vsel %vm707, %v703, inf
      %709 = vmin.xlane.f32.xlu0 %v708
      %v710 = vpop.xlane.xlu0 %709
      %v711 = vcvt.f32.s32 %v710
      %v712 = vcvt.f32.s32 %v706
      %v713 = vshll.u32 %v712, 16
      %v714 = vadd.s32 %v713, %v711
      %v715 = vsub.f32 %v299, %v299
      %v716 = vsub.f32 %v302, %v302
      %v717 = vsub.f32 %v305, %v305
      %v718 = vsub.f32 %v308, %v308
      %v719 = vsub.f32 %v311, %v311
      %v720 = vsub.f32 %v314, %v314
      %v721 = vsub.f32 %v317, %v317
      %v722 = vsub.f32 %v320, %v320
      %v723 = vsub.f32 %v323, %v323
      %v724 = vsub.f32 %v326, %v326
      %v725 = vsub.f32 %v329, %v329
      %v726 = vsub.f32 %v332, %v332
      %v727 = vsub.f32 %v335, %v335
      %v728 = vsub.f32 %v338, %v338
      %v729 = vsub.f32 %v341, %v341
      %v730 = vsub.f32 %v344, %v344
      %v731 = vmul.f32 %v715, 1.442695
      %v732 = vpow.pop %v731
      %v733 = vmul.f32 %v716, 1.442695
      %v734 = vpow.pop %v733
      %v735 = vmul.f32 %v717, 1.442695
      %v736 = vpow.pop %v735
      %v737 = vmul.f32 %v718, 1.442695
      %v738 = vpow.pop %v737
      %v739 = vmul.f32 %v719, 1.442695
      %v740 = vpow.pop %v739
      %v741 = vmul.f32 %v720, 1.442695
      %v742 = vpow.pop %v741
      %v743 = vmul.f32 %v721, 1.442695
      %v744 = vpow.pop %v743
      %v745 = vmul.f32 %v722, 1.442695
      %v746 = vpow.pop %v745
      %v747 = vmul.f32 %v723, 1.442695
      %v748 = vpow.pop %v747
      %v749 = vmul.f32 %v724, 1.442695
      %v750 = vpow.pop %v749
      %v751 = vmul.f32 %v725, 1.442695
      %v752 = vpow.pop %v751
      %v753 = vmul.f32 %v726, 1.442695
      %v754 = vpow.pop %v753
      %v755 = vmul.f32 %v727, 1.442695
      %v756 = vpow.pop %v755
      %v757 = vmul.f32 %v728, 1.442695
      %v758 = vpow.pop %v757
      %v759 = vmul.f32 %v729, 1.442695
      %v760 = vpow.pop %v759
      %v761 = vmul.f32 %v730, 1.442695
      %v762 = vpow.pop %v761
      %v763 = vrcp.pop %v395
      %v764 = vmul.f32 %v732, %v763
      %v765 = vrcp.pop %v398
      %v766 = vmul.f32 %v734, %v765
      %v767 = vrcp.pop %v401
      %v768 = vmul.f32 %v736, %v767
      %v769 = vrcp.pop %v404
      %v770 = vmul.f32 %v738, %v769
      %v771 = vrcp.pop %v407
      %v772 = vmul.f32 %v740, %v771
      %v773 = vrcp.pop %v410
      %v774 = vmul.f32 %v742, %v773
      %v775 = vrcp.pop %v413
      %v776 = vmul.f32 %v744, %v775
      %v777 = vrcp.pop %v416
      %v778 = vmul.f32 %v746, %v777
      %v779 = vrcp.pop %v419
      %v780 = vmul.f32 %v748, %v779
      %v781 = vrcp.pop %v422
      %v782 = vmul.f32 %v750, %v781
      %v783 = vrcp.pop %v425
      %v784 = vmul.f32 %v752, %v783
      %v785 = vrcp.pop %v428
      %v786 = vmul.f32 %v754, %v785
      %v787 = vrcp.pop %v431
      %v788 = vmul.f32 %v756, %v787
      %v789 = vrcp.pop %v434
      %v790 = vmul.f32 %v758, %v789
      %v791 = vrcp.pop %v437
      %v792 = vmul.f32 %v760, %v791
      %v793 = vrcp.pop %v440
      %v794 = vmul.f32 %v762, %v793
      %v795 = vld [vmem:[%s260] sm:$0xff]
      %v796 = vld [vmem:[%s260 + $0x8] sm:$0xff]
      %v797 = vld [vmem:[%s260 + $0x10] sm:$0xff]
      %v798 = vld [vmem:[%s260 + $0x18] sm:$0xff]
      %v799 = vld [vmem:[%s260 + $0x20] sm:$0xff]
      %v800 = vld [vmem:[%s260 + $0x28] sm:$0xff]
      %v801 = vld [vmem:[%s260 + $0x30] sm:$0xff]
      %v802 = vld [vmem:[%s260 + $0x38] sm:$0xff]
      %v803 = vld [vmem:[%s260 + $0x40] sm:$0xff]
      %v804 = vld [vmem:[%s260 + $0x48] sm:$0xff]
      %v805 = vld [vmem:[%s260 + $0x50] sm:$0xff]
      %v806 = vld [vmem:[%s260 + $0x58] sm:$0xff]
      %v807 = vld [vmem:[%s260 + $0x60] sm:$0xff]
      %v808 = vld [vmem:[%s260 + $0x68] sm:$0xff]
      %v809 = vld [vmem:[%s260 + $0x70] sm:$0xff]
      %v810 = vld [vmem:[%s260 + $0x78] sm:$0xff]
      %vm811 = vcmp.eq.s32.totalorder %v489, %v795
      %vm812 = vcmp.eq.s32.totalorder %v504, %v796
      %vm813 = vcmp.eq.s32.totalorder %v519, %v797
      %vm814 = vcmp.eq.s32.totalorder %v534, %v798
      %vm815 = vcmp.eq.s32.totalorder %v549, %v799
      %vm816 = vcmp.eq.s32.totalorder %v564, %v800
      %vm817 = vcmp.eq.s32.totalorder %v579, %v801
      %vm818 = vcmp.eq.s32.totalorder %v594, %v802
      %vm819 = vcmp.eq.s32.totalorder %v609, %v803
      %vm820 = vcmp.eq.s32.totalorder %v624, %v804
      %vm821 = vcmp.eq.s32.totalorder %v639, %v805
      %vm822 = vcmp.eq.s32.totalorder %v654, %v806
      %vm823 = vcmp.eq.s32.totalorder %v669, %v807
      %vm824 = vcmp.eq.s32.totalorder %v684, %v808
      %vm825 = vcmp.eq.s32.totalorder %v699, %v809
      %vm826 = vcmp.eq.s32.totalorder %v714, %v810
      %v827 = vsel %vm811, 1, 0
      %v828 = vsel %vm812, 1, 0
      %v829 = vsel %vm813, 1, 0
      %v830 = vsel %vm814, 1, 0
      %v831 = vsel %vm815, 1, 0
      %v832 = vsel %vm816, 1, 0
      %v833 = vsel %vm817, 1, 0
      %v834 = vsel %vm818, 1, 0
      %v835 = vsel %vm819, 1, 0
      %v836 = vsel %vm820, 1, 0
      %v837 = vsel %vm821, 1, 0
      %v838 = vsel %vm822, 1, 0
      %v839 = vsel %vm823, 1, 0
      %v840 = vsel %vm824, 1, 0
      %v841 = vsel %vm825, 1, 0
      %v842 = vsel %vm826, 1, 0
      %v843 = vcvt.s32.f32 %v827
      %v844 = vcvt.s32.f32 %v828
      %v845 = vcvt.s32.f32 %v829
      %v846 = vcvt.s32.f32 %v830
      %v847 = vcvt.s32.f32 %v831
      %v848 = vcvt.s32.f32 %v832
      %v849 = vcvt.s32.f32 %v833
      %v850 = vcvt.s32.f32 %v834
      %v851 = vcvt.s32.f32 %v835
      %v852 = vcvt.s32.f32 %v836
      %v853 = vcvt.s32.f32 %v837
      %v854 = vcvt.s32.f32 %v838
      %v855 = vcvt.s32.f32 %v839
      %v856 = vcvt.s32.f32 %v840
      %v857 = vcvt.s32.f32 %v841
      %v858 = vcvt.s32.f32 %v842
      %v859 = vlaneseq
      %v860 = vshrl.u32 %v859, 7
      %v861 = vadd.s32 %v860, 8
      %v862 = vadd.s32 %v860, 16
      %v863 = vadd.s32 %v860, 24
      %v864 = vadd.s32 %v860, 32
      %v865 = vadd.s32 %v860, 40
      %v866 = vadd.s32 %v860, 48
      %v867 = vadd.s32 %v860, 56
      %v868 = vadd.s32 %v860, 64
      %v869 = vadd.s32 %v860, 72
      %v870 = vadd.s32 %v860, 80
      %v871 = vadd.s32 %v860, 88
      %v872 = vadd.s32 %v860, 96
      %v873 = vadd.s32 %v860, 104
      %v874 = vadd.s32 %v860, 112
      %v875 = vadd.s32 %v860, 120
      %s876 = smul.u32 %s17, 2
      %s877 = sadd.s32 %s876, %s18
      %s878 = smul.u32 %s877, 128
      %v879 = vstv %s878
      %v880 = vadd.s32 %v879, %v860
      %v881 = vadd.s32 %v879, %v861
      %v882 = vadd.s32 %v879, %v862
      %v883 = vadd.s32 %v879, %v863
      %v884 = vadd.s32 %v879, %v864
      %v885 = vadd.s32 %v879, %v865
      %v886 = vadd.s32 %v879, %v866
      %v887 = vadd.s32 %v879, %v867
      %v888 = vadd.s32 %v879, %v868
      %v889 = vadd.s32 %v879, %v869
      %v890 = vadd.s32 %v879, %v870
      %v891 = vadd.s32 %v879, %v871
      %v892 = vadd.s32 %v879, %v872
      %v893 = vadd.s32 %v879, %v873
      %v894 = vadd.s32 %v879, %v874
      %v895 = vadd.s32 %v879, %v875
      %vm896 = vcmp.lt.s32.totalorder %v880, 300
      %vm897 = vcmp.lt.s32.totalorder %v881, 300
      %vm898 = vcmp.lt.s32.totalorder %v882, 300
      %vm899 = vcmp.lt.s32.totalorder %v883, 300
      %vm900 = vcmp.lt.s32.totalorder %v884, 300
      %vm901 = vcmp.lt.s32.totalorder %v885, 300
      %vm902 = vcmp.lt.s32.totalorder %v886, 300
      %vm903 = vcmp.lt.s32.totalorder %v887, 300
      %vm904 = vcmp.lt.s32.totalorder %v888, 300
      %vm905 = vcmp.lt.s32.totalorder %v889, 300
      %vm906 = vcmp.lt.s32.totalorder %v890, 300
      %vm907 = vcmp.lt.s32.totalorder %v891, 300
      %vm908 = vcmp.lt.s32.totalorder %v892, 300
      %vm909 = vcmp.lt.s32.totalorder %v893, 300
      %vm910 = vcmp.lt.s32.totalorder %v894, 300
      %vm911 = vcmp.lt.s32.totalorder %v895, 300
      %v912 = vsel %vm896, %v764, 0.0
      %v913 = vsel %vm897, %v766, 0.0
      %v914 = vsel %vm898, %v768, 0.0
      %v915 = vsel %vm899, %v770, 0.0
      %v916 = vsel %vm900, %v772, 0.0
      %v917 = vsel %vm901, %v774, 0.0
      %v918 = vsel %vm902, %v776, 0.0
      %v919 = vsel %vm903, %v778, 0.0
      %v920 = vsel %vm904, %v780, 0.0
      %v921 = vsel %vm905, %v782, 0.0
      %v922 = vsel %vm906, %v784, 0.0
      %v923 = vsel %vm907, %v786, 0.0
      %v924 = vsel %vm908, %v788, 0.0
      %v925 = vsel %vm909, %v790, 0.0
      %v926 = vsel %vm910, %v792, 0.0
      %v927 = vsel %vm911, %v794, 0.0
      %v928 = vmul.f32 %v912, 10.0
      %v929 = vmul.f32 %v913, 10.0
      %v930 = vmul.f32 %v914, 10.0
      %v931 = vmul.f32 %v915, 10.0
      %v932 = vmul.f32 %v916, 10.0
      %v933 = vmul.f32 %v917, 10.0
      %v934 = vmul.f32 %v918, 10.0
      %v935 = vmul.f32 %v919, 10.0
      %v936 = vmul.f32 %v920, 10.0
      %v937 = vmul.f32 %v921, 10.0
      %v938 = vmul.f32 %v922, 10.0
      %v939 = vmul.f32 %v923, 10.0
      %v940 = vmul.f32 %v924, 10.0
      %v941 = vmul.f32 %v925, 10.0
      %v942 = vmul.f32 %v926, 10.0
      %v943 = vmul.f32 %v927, 10.0
      %v944 = vceil.f32 %v928
      %v945 = vceil.f32 %v929
      %v946 = vceil.f32 %v930
      %v947 = vceil.f32 %v931
      %v948 = vceil.f32 %v932
      %v949 = vceil.f32 %v933
      %v950 = vceil.f32 %v934
      %v951 = vceil.f32 %v935
      %v952 = vceil.f32 %v936
      %v953 = vceil.f32 %v937
      %v954 = vceil.f32 %v938
      %v955 = vceil.f32 %v939
      %v956 = vceil.f32 %v940
      %v957 = vceil.f32 %v941
      %v958 = vceil.f32 %v942
      %v959 = vceil.f32 %v943
      %v960 = vcvt.f32.s32.to.zero.pseudo %v944
      %v961 = vcvt.f32.s32.to.zero.pseudo %v945
      %v962 = vcvt.f32.s32.to.zero.pseudo %v946
      %v963 = vcvt.f32.s32.to.zero.pseudo %v947
      %v964 = vcvt.f32.s32.to.zero.pseudo %v948
      %v965 = vcvt.f32.s32.to.zero.pseudo %v949
      %v966 = vcvt.f32.s32.to.zero.pseudo %v950
      %v967 = vcvt.f32.s32.to.zero.pseudo %v951
      %v968 = vcvt.f32.s32.to.zero.pseudo %v952
      %v969 = vcvt.f32.s32.to.zero.pseudo %v953
      %v970 = vcvt.f32.s32.to.zero.pseudo %v954
      %v971 = vcvt.f32.s32.to.zero.pseudo %v955
      %v972 = vcvt.f32.s32.to.zero.pseudo %v956
      %v973 = vcvt.f32.s32.to.zero.pseudo %v957
      %v974 = vcvt.f32.s32.to.zero.pseudo %v958
      %v975 = vcvt.f32.s32.to.zero.pseudo %v959
      %v976 = vsub.s32 %v960, 1
      %v977 = vsub.s32 %v961, 1
      %v978 = vsub.s32 %v962, 1
      %v979 = vsub.s32 %v963, 1
      %v980 = vsub.s32 %v964, 1
      %v981 = vsub.s32 %v965, 1
      %v982 = vsub.s32 %v966, 1
      %v983 = vsub.s32 %v967, 1
      %v984 = vsub.s32 %v968, 1
      %v985 = vsub.s32 %v969, 1
      %v986 = vsub.s32 %v970, 1
      %v987 = vsub.s32 %v971, 1
      %v988 = vsub.s32 %v972, 1
      %v989 = vsub.s32 %v973, 1
      %v990 = vsub.s32 %v974, 1
      %v991 = vsub.s32 %v975, 1
      %vm992 = vcmp.eq.s32.totalorder %v976, %v442
      %vm993 = vcmp.eq.s32.totalorder %v977, %v442
      %vm994 = vcmp.eq.s32.totalorder %v978, %v442
      %vm995 = vcmp.eq.s32.totalorder %v979, %v442
      %vm996 = vcmp.eq.s32.totalorder %v980, %v442
      %vm997 = vcmp.eq.s32.totalorder %v981, %v442
      %vm998 = vcmp.eq.s32.totalorder %v982, %v442
      %vm999 = vcmp.eq.s32.totalorder %v983, %v442
      %vm1000 = vcmp.eq.s32.totalorder %v984, %v442
      %vm1001 = vcmp.eq.s32.totalorder %v985, %v442
      %vm1002 = vcmp.eq.s32.totalorder %v986, %v442
      %vm1003 = vcmp.eq.s32.totalorder %v987, %v442
      %vm1004 = vcmp.eq.s32.totalorder %v988, %v442
      %vm1005 = vcmp.eq.s32.totalorder %v989, %v442
      %vm1006 = vcmp.eq.s32.totalorder %v990, %v442
      %vm1007 = vcmp.eq.s32.totalorder %v991, %v442
      %v1008 = vsel %vm992, 1, 0
      %v1009 = vsel %vm993, 1, 0
      %v1010 = vsel %vm994, 1, 0
      %v1011 = vsel %vm995, 1, 0
      %v1012 = vsel %vm996, 1, 0
      %v1013 = vsel %vm997, 1, 0
      %v1014 = vsel %vm998, 1, 0
      %v1015 = vsel %vm999, 1, 0
      %v1016 = vsel %vm1000, 1, 0
      %v1017 = vsel %vm1001, 1, 0
      %v1018 = vsel %vm1002, 1, 0
      %v1019 = vsel %vm1003, 1, 0
      %v1020 = vsel %vm1004, 1, 0
      %v1021 = vsel %vm1005, 1, 0
      %v1022 = vsel %vm1006, 1, 0
      %v1023 = vsel %vm1007, 1, 0
      %v1024 = vcvt.s32.f32 %v1008
      %v1025 = vcvt.s32.f32 %v1009
      %v1026 = vcvt.s32.f32 %v1010
      %v1027 = vcvt.s32.f32 %v1011
      %v1028 = vcvt.s32.f32 %v1012
      %v1029 = vcvt.s32.f32 %v1013
      %v1030 = vcvt.s32.f32 %v1014
      %v1031 = vcvt.s32.f32 %v1015
      %v1032 = vcvt.s32.f32 %v1016
      %v1033 = vcvt.s32.f32 %v1017
      %v1034 = vcvt.s32.f32 %v1018
      %v1035 = vcvt.s32.f32 %v1019
      %v1036 = vcvt.s32.f32 %v1020
      %v1037 = vcvt.s32.f32 %v1021
      %v1038 = vcvt.s32.f32 %v1022
      %v1039 = vcvt.s32.f32 %v1023
      %vm1040 = vcmask 80896
      %v1041 = vsel %vm1040, %v1024, 0.0
      %v1042 = vsel %vm1040, %v1025, 0.0
      %v1043 = vadd.f32 %v1041, %v1042
      %v1044 = vsel %vm1040, %v1026, 0.0
      %v1045 = vadd.f32 %v1043, %v1044
      %v1046 = vsel %vm1040, %v1027, 0.0
      %v1047 = vadd.f32 %v1045, %v1046
      %v1048 = vsel %vm1040, %v1028, 0.0
      %v1049 = vadd.f32 %v1047, %v1048
      %v1050 = vsel %vm1040, %v1029, 0.0
      %v1051 = vadd.f32 %v1049, %v1050
      %v1052 = vsel %vm1040, %v1030, 0.0
      %v1053 = vadd.f32 %v1051, %v1052
      %v1054 = vsel %vm1040, %v1031, 0.0
      %v1055 = vadd.f32 %v1053, %v1054
      %v1056 = vsel %vm1040, %v1032, 0.0
      %v1057 = vadd.f32 %v1055, %v1056
      %v1058 = vsel %vm1040, %v1033, 0.0
      %v1059 = vadd.f32 %v1057, %v1058
      %v1060 = vsel %vm1040, %v1034, 0.0
      %v1061 = vadd.f32 %v1059, %v1060
      %v1062 = vsel %vm1040, %v1035, 0.0
      %v1063 = vadd.f32 %v1061, %v1062
      %v1064 = vsel %vm1040, %v1036, 0.0
      %v1065 = vadd.f32 %v1063, %v1064
      %v1066 = vsel %vm1040, %v1037, 0.0
      %v1067 = vadd.f32 %v1065, %v1066
      %v1068 = vsel %vm1040, %v1038, 0.0
      %v1069 = vadd.f32 %v1067, %v1068
      %v1070 = vsel %vm1040, %v1039, 0.0
      %v1071 = vadd.f32 %v1069, %v1070
      %v1072 = vrot.slane %v1071, 4
      %v1073 = vadd.f32 %v1071, %v1072
      %v1074 = vrot.slane %v1073, 2
      %v1075 = vadd.f32 %v1073, %v1074
      %v1076 = vrot.slane %v1075, 1
      %v1077 = vadd.f32 %v1075, %v1076
      %v1078 = vmul.f32 %v1024, %v912
      %v1079 = vmul.f32 %v1025, %v913
      %v1080 = vmul.f32 %v1026, %v914
      %v1081 = vmul.f32 %v1027, %v915
      %v1082 = vmul.f32 %v1028, %v916
      %v1083 = vmul.f32 %v1029, %v917
      %v1084 = vmul.f32 %v1030, %v918
      %v1085 = vmul.f32 %v1031, %v919
      %v1086 = vmul.f32 %v1032, %v920
      %v1087 = vmul.f32 %v1033, %v921
      %v1088 = vmul.f32 %v1034, %v922
      %v1089 = vmul.f32 %v1035, %v923
      %v1090 = vmul.f32 %v1036, %v924
      %v1091 = vmul.f32 %v1037, %v925
      %v1092 = vmul.f32 %v1038, %v926
      %v1093 = vmul.f32 %v1039, %v927
      %v1094 = vsel %vm1040, %v1078, 0.0
      %v1095 = vsel %vm1040, %v1079, 0.0
      %v1096 = vadd.f32 %v1094, %v1095
      %v1097 = vsel %vm1040, %v1080, 0.0
      %v1098 = vadd.f32 %v1096, %v1097
      %v1099 = vsel %vm1040, %v1081, 0.0
      %v1100 = vadd.f32 %v1098, %v1099
      %v1101 = vsel %vm1040, %v1082, 0.0
      %v1102 = vadd.f32 %v1100, %v1101
      %v1103 = vsel %vm1040, %v1083, 0.0
      %v1104 = vadd.f32 %v1102, %v1103
      %v1105 = vsel %vm1040, %v1084, 0.0
      %v1106 = vadd.f32 %v1104, %v1105
      %v1107 = vsel %vm1040, %v1085, 0.0
      %v1108 = vadd.f32 %v1106, %v1107
      %v1109 = vsel %vm1040, %v1086, 0.0
      %v1110 = vadd.f32 %v1108, %v1109
      %v1111 = vsel %vm1040, %v1087, 0.0
      %v1112 = vadd.f32 %v1110, %v1111
      %v1113 = vsel %vm1040, %v1088, 0.0
      %v1114 = vadd.f32 %v1112, %v1113
      %v1115 = vsel %vm1040, %v1089, 0.0
      %v1116 = vadd.f32 %v1114, %v1115
      %v1117 = vsel %vm1040, %v1090, 0.0
      %v1118 = vadd.f32 %v1116, %v1117
      %v1119 = vsel %vm1040, %v1091, 0.0
      %v1120 = vadd.f32 %v1118, %v1119
      %v1121 = vsel %vm1040, %v1092, 0.0
      %v1122 = vadd.f32 %v1120, %v1121
      %v1123 = vsel %vm1040, %v1093, 0.0
      %v1124 = vadd.f32 %v1122, %v1123
      %v1125 = vrot.slane %v1124, 4
      %v1126 = vadd.f32 %v1124, %v1125
      %v1127 = vrot.slane %v1126, 2
      %v1128 = vadd.f32 %v1126, %v1127
      %v1129 = vrot.slane %v1128, 1
      %v1130 = vadd.f32 %v1128, %v1129
      %1132 = vset.pattern.permute.xlu0 0
      %1133 = vperm.xlu0 %1132, %v843
      %v1134 = vpop.permute.xlu0 %1133
      %1137 = vset.pattern.permute.xlu0 0
      %1138 = vperm.xlu0 %1137, %v844
      %v1139 = vpop.permute.xlu0 %1138
      %1142 = vset.pattern.permute.xlu0 0
      %1143 = vperm.xlu0 %1142, %v845
      %v1144 = vpop.permute.xlu0 %1143
      %1147 = vset.pattern.permute.xlu0 0
      %1148 = vperm.xlu0 %1147, %v846
      %v1149 = vpop.permute.xlu0 %1148
      %1152 = vset.pattern.permute.xlu0 0
      %1153 = vperm.xlu0 %1152, %v847
      %v1154 = vpop.permute.xlu0 %1153
      %1157 = vset.pattern.permute.xlu0 0
      %1158 = vperm.xlu0 %1157, %v848
      %v1159 = vpop.permute.xlu0 %1158
      %1162 = vset.pattern.permute.xlu0 0
      %1163 = vperm.xlu0 %1162, %v849
      %v1164 = vpop.permute.xlu0 %1163
      %1167 = vset.pattern.permute.xlu0 0
      %1168 = vperm.xlu0 %1167, %v850
      %v1169 = vpop.permute.xlu0 %1168
      %1172 = vset.pattern.permute.xlu0 0
      %1173 = vperm.xlu0 %1172, %v851
      %v1174 = vpop.permute.xlu0 %1173
      %1177 = vset.pattern.permute.xlu0 0
      %1178 = vperm.xlu0 %1177, %v852
      %v1179 = vpop.permute.xlu0 %1178
      %1182 = vset.pattern.permute.xlu0 0
      %1183 = vperm.xlu0 %1182, %v853
      %v1184 = vpop.permute.xlu0 %1183
      %1187 = vset.pattern.permute.xlu0 0
      %1188 = vperm.xlu0 %1187, %v854
      %v1189 = vpop.permute.xlu0 %1188
      %1192 = vset.pattern.permute.xlu0 0
      %1193 = vperm.xlu0 %1192, %v855
      %v1194 = vpop.permute.xlu0 %1193
      %1197 = vset.pattern.permute.xlu0 0
      %1198 = vperm.xlu0 %1197, %v856
      %v1199 = vpop.permute.xlu0 %1198
      %1202 = vset.pattern.permute.xlu0 0
      %1203 = vperm.xlu0 %1202, %v857
      %v1204 = vpop.permute.xlu0 %1203
      %1207 = vset.pattern.permute.xlu0 0
      %1208 = vperm.xlu0 %1207, %v858
      %v1209 = vpop.permute.xlu0 %1208
      %v1211 = vmul.f32 %v1024, %v1134
      %v1212 = vmul.f32 %v1025, %v1139
      %v1213 = vmul.f32 %v1026, %v1144
      %v1214 = vmul.f32 %v1027, %v1149
      %v1215 = vmul.f32 %v1028, %v1154
      %v1216 = vmul.f32 %v1029, %v1159
      %v1217 = vmul.f32 %v1030, %v1164
      %v1218 = vmul.f32 %v1031, %v1169
      %v1219 = vmul.f32 %v1032, %v1174
      %v1220 = vmul.f32 %v1033, %v1179
      %v1221 = vmul.f32 %v1034, %v1184
      %v1222 = vmul.f32 %v1035, %v1189
      %v1223 = vmul.f32 %v1036, %v1194
      %v1224 = vmul.f32 %v1037, %v1199
      %v1225 = vmul.f32 %v1038, %v1204
      %v1226 = vmul.f32 %v1039, %v1209
      %v1227 = vsel %vm1040, %v1211, 0.0
      %v1228 = vsel %vm1040, %v1212, 0.0
      %v1229 = vadd.f32 %v1227, %v1228
      %v1230 = vsel %vm1040, %v1213, 0.0
      %v1231 = vadd.f32 %v1229, %v1230
      %v1232 = vsel %vm1040, %v1214, 0.0
      %v1233 = vadd.f32 %v1231, %v1232
      %v1234 = vsel %vm1040, %v1215, 0.0
      %v1235 = vadd.f32 %v1233, %v1234
      %v1236 = vsel %vm1040, %v1216, 0.0
      %v1237 = vadd.f32 %v1235, %v1236
      %v1238 = vsel %vm1040, %v1217, 0.0
      %v1239 = vadd.f32 %v1237, %v1238
      %v1240 = vsel %vm1040, %v1218, 0.0
      %v1241 = vadd.f32 %v1239, %v1240
      %v1242 = vsel %vm1040, %v1219, 0.0
      %v1243 = vadd.f32 %v1241, %v1242
      %v1244 = vsel %vm1040, %v1220, 0.0
      %v1245 = vadd.f32 %v1243, %v1244
      %v1246 = vsel %vm1040, %v1221, 0.0
      %v1247 = vadd.f32 %v1245, %v1246
      %v1248 = vsel %vm1040, %v1222, 0.0
      %v1249 = vadd.f32 %v1247, %v1248
      %v1250 = vsel %vm1040, %v1223, 0.0
      %v1251 = vadd.f32 %v1249, %v1250
      %v1252 = vsel %vm1040, %v1224, 0.0
      %v1253 = vadd.f32 %v1251, %v1252
      %v1254 = vsel %vm1040, %v1225, 0.0
      %v1255 = vadd.f32 %v1253, %v1254
      %v1256 = vsel %vm1040, %v1226, 0.0
      %v1257 = vadd.f32 %v1255, %v1256
      %v1258 = vrot.slane %v1257, 4
      %v1259 = vadd.f32 %v1257, %v1258
      %v1260 = vrot.slane %v1259, 2
      %v1261 = vadd.f32 %v1259, %v1260
      %v1262 = vrot.slane %v1261, 1
      %v1263 = vadd.f32 %v1261, %v1262
      %vm1264 = vcmask 1040384
      %v1265 = vsel %vm1264, %v1077, %v1130
      %vm1266 = vcmask 1041408
      %v1267 = vsel %vm1266, %v1265, %v1263
      %v1268 = vld [vmem:[%s273] sm:$0x7]
      %v1269 = vadd.f32 %v1268, %v1267
      %vm1270 = vcmask 75776
      %1271 = vst.msk [vmem:[%s273] sm:$0x7] %vm1270, %v1269
      %p1272 = scmp.lt.s32.totalorder %s17, 1
      %s1273 = scalar_select %p1272, %s17, 1
      %s1274 = smul.addr %s1273, 4
      %s1275 = scalar_lea.vmem %s2, %s1274
      // Predicated region
      $region33: #{tpu_custom_call.1} parent=27 // pred_check
        %p1276 = pneg %p111
      $region34: #{tpu_custom_call.1} parent=27 // pred_check_branch
        %1278 = sbr.rel (%p1276) target = $region36
      $region35: #{tpu_custom_call.1} parent=27 // pred_region
        _
      $region36: #{tpu_custom_call.1} parent=27 // pred_fallthru
        _
    $region28: #{tpu_custom_call.1} parent=5 // pred_fallthru
      _
    %p1279 = scmp.le.s32.totalorder 2, %s8
    // Predicated region
    $region37: #{tpu_custom_call.1} parent=5 // pred_check
      %p1280 = pneg %p1279
    $region38: #{tpu_custom_call.1} parent=5 // pred_check_branch
      %1282 = sbr.rel (%p1280) target = $region40
    $region39: #{tpu_custom_call.1} parent=5 // pred_region
      %s1283 = ssub.s32 %s8, 2
      // Predicated region
      $region41: #{tpu_custom_call.1} parent=39 // pred_check
        %p1284 = pneg %p117
      $region42: #{tpu_custom_call.1} parent=39 // pred_check_branch
        %1286 = sbr.rel (%p1284) target = $region44
      $region43: #{tpu_custom_call.1} parent=39 // pred_region
        %p1287 = scmp.lt.s32.totalorder %s19, 1
        %s1288 = scalar_select %p1287, %s19, 1
        %s1289 = smul.addr %s1288, 4
        %s1290 = scalar_lea.vmem %s2, %s1289
      $region44: #{tpu_custom_call.1} parent=39 // pred_fallthru
        _
    $region40: #{tpu_custom_call.1} parent=5 // pred_fallthru
      _
  $region6: #{tpu_custom_call.1} parent=0 // loop_footer
    %s12 = sadd.s32 1, %s8
  $region7: #{tpu_custom_call.1} parent=0 // loop_footer_branch
    %7 = sbr.rel target = $region3
  $region8: #{tpu_custom_call.1} parent=0 // loop_exit
    _

</llo_original>
